<compile_context>
chip_gen: v5e
topology: v5e:2x2
jax: 0.10.0
libtpu: 0.0.40
codegen_flags: <defaults>
</compile_context>

<pallas_src>
import functools

import jax
import jax.numpy as jnp
from jax.experimental import pallas as pl
from jax.experimental.pallas import tpu as pltpu


def _round_up(x, m):
    return ((x + m - 1) // m) * m


def llama_mlp_kernel(x_ref, lnw_ref, wg_ref, wu_ref, w2_ref, o_ref,
                     xn_ref, acc_ref, *, eps):
    f = pl.program_id(1)
    nf = pl.num_programs(1)

    # --- per-token-tile init: RMSNorm (f32, like LlamaRMSNorm) + zero acc ---
    @pl.when(f == 0)
    def _init():
        x = x_ref[...].astype(jnp.float32)                       # (tm, H)
        var = jnp.mean(x * x, axis=-1, keepdims=True)            # (tm, 1)
        xn = x * jax.lax.rsqrt(var + eps)
        xn = xn * lnw_ref[...].astype(jnp.float32)               # (1, H) bcast
        xn_ref[...] = xn.astype(xn_ref.dtype)                    # weight dtype
        acc_ref[...] = jnp.zeros_like(acc_ref)

    # --- one ffn tile: gate/up projections, fused SwiGLU, accumulate W2 ---
    xn = xn_ref[...]                                             # (tm, H)
    gate = jnp.dot(xn, wg_ref[...], preferred_element_type=jnp.float32)
    up = jnp.dot(xn, wu_ref[...], preferred_element_type=jnp.float32)
    act = (gate * jax.nn.sigmoid(gate)) * up                     # (tm, tf) f32
    # Keep as one fused accumulate so Mosaic can use in-place MXU accumulation.
    acc_ref[...] += jnp.dot(act.astype(w2_ref.dtype), w2_ref[...],
                            preferred_element_type=jnp.float32)  # (tm, H)

    # --- finalize: residual add (pre-norm f32 x) + cast + store ---
    @pl.when(f == nf - 1)
    def _finalize():
        residual = x_ref[...].astype(jnp.float32)
        o_ref[...] = (acc_ref[...] + residual).astype(o_ref.dtype)


def _vmem_estimate(tm, tf, H, x_itemsize, w_itemsize):
    # default double-buffered pipelined blocks + resident scratch, with headroom
    io = 2 * (tm * H * x_itemsize)            # x in
    io += 2 * (tm * H * x_itemsize)           # out
    io += 2 * (1 * H * w_itemsize)            # ln weight
    io += 2 * 2 * (H * tf * w_itemsize)       # gate, up tiles
    io += 2 * (tf * H * w_itemsize)           # w2 tile
    scratch = tm * H * w_itemsize + tm * H * 4  # xn + f32 acc
    return int((io + scratch) * 1.15)


def _vmem_capacity_bytes():
    """Generation-aware VMEM capacity (v5e/v6e: 128 MiB, v7x: 64 MiB/TC)."""
    try:
        info = pltpu.get_tpu_info()
        cap = getattr(info, "vmem_capacity_bytes", None)
        if cap:
            return int(cap)
    except Exception:
        pass
    return 128 * 1024 * 1024


def _choose_tf(F, tf_override):
    if tf_override is not None:
        return int(tf_override)
    # Prefer 256 (review: don't go below 256, shrink from 512 to pay for tm);
    # must divide F exactly so weights stream in place with zero copies.
    for cand in (256, 512, 384, 128):
        if F % cand == 0:
            return cand
    return None  # F not a multiple of 128 -> padded fallback path


def llama_mlp_tp(hidden_states, ln_weight, w1, w2, *, eps=1e-6,
                 tm=None, tf=None):
    """hidden_states: (B, S, H); ln_weight: (H,); w1: (H, 2F) gate|up; w2: (F, H)."""
    B, S, H = hidden_states.shape
    F = w2.shape[0]
    T = B * S

    x_itemsize = jnp.dtype(hidden_states.dtype).itemsize
    w_dtype = w1.dtype
    w_itemsize = jnp.dtype(w_dtype).itemsize

    vmem_cap = _vmem_capacity_bytes()
    small_vmem = vmem_cap <= 96 * 1024 * 1024      # v7x-class (64 MiB / TC)
    budget = int(0.80 * vmem_cap)

    # --- ffn tile size -----------------------------------------------------
    tf_sel = _choose_tf(F, tf)
    padded_path = tf_sel is None
    if padded_path:
        # Rare fallback (F not a multiple of 128): slice + zero-pad weights.
        # Zero-padded ffn columns contribute silu(0)*0 = 0 -> no effect.
        tf_sel = max(128, min(256, _round_up(F, 128)))
        tf_sel = _round_up(tf_sel, 128)
        F_pad = _round_up(F, tf_sel)
    else:
        F_pad = F

    # --- token tile size: as big as the VMEM budget allows ------------------
    T8 = _round_up(T, 8)
    tm_target = tm if tm is not None else (512 if small_vmem else 1024)
    tm_sel = _round_up(max(8, min(tm_target, T8)), 8)
    while (_vmem_estimate(tm_sel, tf_sel, H, x_itemsize, w_itemsize) > budget
           and tm_sel > 128):
        tm_sel = _round_up(max(128, tm_sel // 2), 8)
    if (_vmem_estimate(tm_sel, tf_sel, H, x_itemsize, w_itemsize) > budget
            and not padded_path and tf_sel > 128 and F % 128 == 0):
        # Last resort for tight VMEM: drop tf to 128 rather than tm further.
        tf_sel = 128
        tm_sel = _round_up(max(8, min(tm_target, T8)), 8)
        while (_vmem_estimate(tm_sel, tf_sel, H, x_itemsize, w_itemsize) > budget
               and tm_sel > 128):
            tm_sel = _round_up(max(128, tm_sel // 2), 8)

    # v7x: keep >= 2 token tiles so the "parallel" axis feeds both TensorCores
    # (the ffn axis is a reduction and cannot be made parallel).
    if small_vmem and tm is None and T8 >= 256 and pl.cdiv(T8, tm_sel) < 2:
        tm_sel = _round_up(pl.cdiv(T8, 2), 8)

    T_pad = _round_up(T, tm_sel)
    nf_blocks = F_pad // tf_sel

    # --- inputs (no per-call weight copies on the fast path) ----------------
    x2d = hidden_states.reshape(T, H)
    if T_pad != T:
        x2d = jnp.pad(x2d, ((0, T_pad - T), (0, 0)))
    lnw2d = ln_weight.reshape(1, H)

    if padded_path:
        wg = w1[:, :F]
        wu = w1[:, F:]
        if F_pad != F:
            wg = jnp.pad(wg, ((0, 0), (0, F_pad - F)))
            wu = jnp.pad(wu, ((0, 0), (0, F_pad - F)))
            w2_in = jnp.pad(w2, ((0, F_pad - F), (0, 0)))
        else:
            w2_in = w2
        gate_arg, up_arg = wg, wu
        gate_map = lambda i, f: (0, f)
        up_map = lambda i, f: (0, f)
    else:
        # Stream gate / up tiles straight out of the concatenated w1:
        # gate occupies column-blocks [0, nF), up occupies [nF, 2*nF).
        gate_arg, up_arg = w1, w1
        w2_in = w2
        gate_map = lambda i, f: (0, f)
        up_map = lambda i, f, _nf=nf_blocks: (0, _nf + f)

    # --- compiler params / cost estimate ------------------------------------
    vmem_est = _vmem_estimate(tm_sel, tf_sel, H, x_itemsize, w_itemsize)
    vmem_limit = max(vmem_est, 32 * 1024 * 1024)
    vmem_limit = min(vmem_limit, int(0.85 * vmem_cap))   # ~54 MiB on v7x
    vmem_limit = max(vmem_limit, vmem_est)               # never below the plan
    vmem_limit = min(vmem_limit, vmem_cap)                # never above physical
    compiler_kwargs = dict(dimension_semantics=("parallel", "arbitrary"),
                           vmem_limit_bytes=int(vmem_limit))

    n_token_tiles = T_pad // tm_sel
    flops = 6 * T_pad * H * F_pad                  # three matmuls, 2*T*H*F each
    transcendentals = T_pad * F_pad                # sigmoid in SwiGLU
    w_bytes = (2 * H * F_pad + F_pad * H) * w_itemsize
    bytes_accessed = (w_bytes * n_token_tiles
                      + 2 * T_pad * H * x_itemsize
                      + H * w_itemsize)
    cost = pl.CostEstimate(flops=int(flops),
                           transcendentals=int(transcendentals),
                           bytes_accessed=int(bytes_accessed))

    kernel = functools.partial(llama_mlp_kernel, eps=eps)

    out2d = pl.pallas_call(
        kernel,
        out_shape=jax.ShapeDtypeStruct((T_pad, H), hidden_states.dtype),
        grid_spec=pltpu.PrefetchScalarGridSpec(
            num_scalar_prefetch=0,
            grid=(n_token_tiles, nf_blocks),            # ffn axis innermost
            in_specs=[
                pl.BlockSpec((tm_sel, H), lambda i, f: (i, 0)),   # x tile (resident over f)
                pl.BlockSpec((1, H), lambda i, f: (0, 0)),        # RMSNorm weight
                pl.BlockSpec((H, tf_sel), gate_map),              # gate weight tile
                pl.BlockSpec((H, tf_sel), up_map),                # up weight tile
                pl.BlockSpec((tf_sel, H), lambda i, f: (f, 0)),   # W2 tile
            ],
            out_specs=pl.BlockSpec((tm_sel, H), lambda i, f: (i, 0)),
            scratch_shapes=[
                pltpu.VMEM((tm_sel, H), w_dtype),       # normalized x, reused over f
                pltpu.VMEM((tm_sel, H), jnp.float32),   # output accumulator
            ],
        ),
        compiler_params=pltpu.CompilerParams(**compiler_kwargs),
        cost_estimate=cost,
    )(x2d, lnw2d, gate_arg, up_arg, w2_in)

    return out2d[:T].reshape(B, S, H)


def reference(hidden_states, ln_weight, w1, w2, eps=1e-6):
    x = hidden_states.astype(jnp.float32)
    var = jnp.mean(x * x, axis=-1, keepdims=True)
    xn = x * jax.lax.rsqrt(var + eps) * ln_weight.astype(jnp.float32)
    h = xn @ w1.astype(jnp.float32)
    F = w2.shape[0]
    gate, up = h[..., :F], h[..., F:]
    act = jax.nn.silu(gate) * up
    y = act @ w2.astype(jnp.float32)
    return (y + x).astype(hidden_states.dtype)


if __name__ == "__main__":
    # Small, TPU-friendly shapes consistent with the module:
    batch, seq, hidden, ffn = 2, 8, 128, 256
    eps = 1e-6

    key = jax.random.PRNGKey(0)
    kx, k1, k2, k3 = jax.random.split(key, 4)

    x = jax.random.normal(kx, (batch, seq, hidden), dtype=jnp.float32)
    ln_weight = 1.0 + 0.01 * jax.random.normal(k1, (hidden,), dtype=jnp.float32)
    w1 = 0.02 * jax.random.normal(k2, (hidden, 2 * ffn), dtype=jnp.float32)
    w2 = 0.02 * jax.random.normal(k3, (ffn, hidden), dtype=jnp.float32)

    out = llama_mlp_tp(x, ln_weight, w1, w2, eps=eps)
    out = jax.block_until_ready(out)

    ref = reference(x, ln_weight, w1, w2, eps=eps)
    assert out.shape == x.shape
    assert jnp.allclose(out, ref, atol=1e-4, rtol=1e-4)

    print("KERNEL_OK")
</pallas_src>

<mosaic_0001>
module attributes {stable_mosaic.version = 11 : i64} {
  func.func @llama_mlp_kernel(%arg0: i32, %arg1: i32, %arg2: memref<16x128xf32, #tpu.memory_space<vmem>>, %arg3: memref<1x128xf32, #tpu.memory_space<vmem>>, %arg4: memref<128x256xf32, #tpu.memory_space<vmem>>, %arg5: memref<128x256xf32, #tpu.memory_space<vmem>>, %arg6: memref<256x128xf32, #tpu.memory_space<vmem>>, %arg7: memref<16x128xf32, #tpu.memory_space<vmem>>, %arg8: memref<16x128xf32, #tpu.memory_space<vmem>>, %arg9: memref<16x128xf32, #tpu.memory_space<vmem>>) attributes {dimension_semantics = [#tpu.dimension_semantics<parallel>, #tpu.dimension_semantics<arbitrary>], iteration_bounds = array<i64: 1, 1>, scalar_prefetch = 0 : i64, scratch_operands = 2 : i64, tpu.core_type = #tpu.core_type<tc>, window_params = [{transform_indices = @transform_0, window_bounds = array<i64: 16, 128>}, {pipeline_mode = #tpu.pipeline_mode<synchronous>, transform_indices = @transform_1, window_bounds = array<i64: 1, 128>}, {transform_indices = @transform_2, window_bounds = array<i64: 128, 256>}, {transform_indices = @transform_3, window_bounds = array<i64: 128, 256>}, {transform_indices = @transform_4, window_bounds = array<i64: 256, 128>}, {transform_indices = @transform_5, window_bounds = array<i64: 16, 128>}]} {
    %c0_i32 = arith.constant 0 : i32
    %0 = arith.cmpi eq, %arg1, %c0_i32 : i32
    %1 = arith.extui %0 : i1 to i32
    %c0_i32_0 = arith.constant 0 : i32
    %2 = arith.cmpi ne, %1, %c0_i32_0 : i32
    scf.if %2 {
      %c0_17 = arith.constant 0 : index
      %c0_18 = arith.constant 0 : index
      %23 = vector.load %arg2[%c0_17, %c0_18] : memref<16x128xf32, #tpu.memory_space<vmem>>, vector<16x128xf32>
      %24 = arith.mulf %23, %23 : vector<16x128xf32>
      %cst_19 = arith.constant dense<0.000000e+00> : vector<16xf32>
      %25 = vector.multi_reduction <add>, %24, %cst_19 [1] : vector<16x128xf32> to vector<16xf32>
      %26 = vector.shape_cast %25 : vector<16xf32> to vector<16x1xf32>
      %cst_20 = arith.constant 1.280000e+02 : f32
      %27 = vector.broadcast %cst_20 : f32 to vector<16x1xf32>
      %28 = arith.divf %26, %27 : vector<16x1xf32>
      %cst_21 = arith.constant 9.99999997E-7 : f32
      %29 = vector.broadcast %cst_21 : f32 to vector<16x1xf32>
      %30 = arith.addf %28, %29 : vector<16x1xf32>
      %31 = math.rsqrt %30 : vector<16x1xf32>
      %32 = vector.broadcast %31 : vector<16x1xf32> to vector<16x128xf32>
      %33 = arith.mulf %23, %32 : vector<16x128xf32>
      %c0_22 = arith.constant 0 : index
      %c0_23 = arith.constant 0 : index
      %34 = vector.load %arg3[%c0_22, %c0_23] : memref<1x128xf32, #tpu.memory_space<vmem>>, vector<1x128xf32>
      %35 = vector.broadcast %34 : vector<1x128xf32> to vector<16x128xf32>
      %36 = arith.mulf %33, %35 : vector<16x128xf32>
      %c0_24 = arith.constant 0 : index
      %c0_25 = arith.constant 0 : index
      %37 = vector.load %arg8[%c0_24, %c0_25] : memref<16x128xf32, #tpu.memory_space<vmem>>, vector<16x128xf32>
      tpu.vector_store %arg8[%c0_24, %c0_25], %36 {strides = array<i32>} : memref<16x128xf32, #tpu.memory_space<vmem>>, vector<16x128xf32>,
      %cst_26 = arith.constant 0.000000e+00 : f32
      %38 = vector.broadcast %cst_26 : f32 to vector<16x128xf32>
      %c0_27 = arith.constant 0 : index
      %c0_28 = arith.constant 0 : index
      %39 = vector.load %arg9[%c0_27, %c0_28] : memref<16x128xf32, #tpu.memory_space<vmem>>, vector<16x128xf32>
      tpu.vector_store %arg9[%c0_27, %c0_28], %38 {strides = array<i32>} : memref<16x128xf32, #tpu.memory_space<vmem>>, vector<16x128xf32>,
    } else {
    }
    %c0 = arith.constant 0 : index
    %c0_1 = arith.constant 0 : index
    %3 = vector.load %arg8[%c0, %c0_1] : memref<16x128xf32, #tpu.memory_space<vmem>>, vector<16x128xf32>
    %c0_2 = arith.constant 0 : index
    %c0_3 = arith.constant 0 : index
    %4 = vector.load %arg4[%c0_2, %c0_3] : memref<128x256xf32, #tpu.memory_space<vmem>>, vector<128x256xf32>
    %cst = arith.constant dense<0.000000e+00> : vector<16x256xf32>
    %5 = tpu.matmul %3, %4, %cst {dimension_numbers = #tpu.dot_dimension_numbers<[1], [0], [0], [1], [0, 0, 1, 1], [], []>} : vector<16x128xf32>, vector<128x256xf32>, vector<16x256xf32> -> vector<16x256xf32>
    %c0_4 = arith.constant 0 : index
    %c0_5 = arith.constant 0 : index
    %6 = vector.load %arg5[%c0_4, %c0_5] : memref<128x256xf32, #tpu.memory_space<vmem>>, vector<128x256xf32>
    %cst_6 = arith.constant dense<0.000000e+00> : vector<16x256xf32>
    %7 = tpu.matmul %3, %6, %cst_6 {dimension_numbers = #tpu.dot_dimension_numbers<[1], [0], [0], [1], [0, 0, 1, 1], [], []>} : vector<16x128xf32>, vector<128x256xf32>, vector<16x256xf32> -> vector<16x256xf32>
    %8 = arith.negf %5 : vector<16x256xf32>
    %9 = math.exp %8 : vector<16x256xf32>
    %cst_7 = arith.constant 1.000000e+00 : f32
    %10 = vector.broadcast %cst_7 : f32 to vector<16x256xf32>
    %11 = arith.addf %10, %9 : vector<16x256xf32>
    %12 = arith.divf %10, %11 : vector<16x256xf32>
    %13 = arith.mulf %5, %12 : vector<16x256xf32>
    %14 = arith.mulf %13, %7 : vector<16x256xf32>
    %c0_8 = arith.constant 0 : index
    %c0_9 = arith.constant 0 : index
    %15 = vector.load %arg9[%c0_8, %c0_9] : memref<16x128xf32, #tpu.memory_space<vmem>>, vector<16x128xf32>
    %c0_10 = arith.constant 0 : index
    %c0_11 = arith.constant 0 : index
    %16 = vector.load %arg6[%c0_10, %c0_11] : memref<256x128xf32, #tpu.memory_space<vmem>>, vector<256x128xf32>
    %cst_12 = arith.constant dense<0.000000e+00> : vector<16x128xf32>
    %17 = tpu.matmul %14, %16, %cst_12 {dimension_numbers = #tpu.dot_dimension_numbers<[1], [0], [0], [1], [0, 0, 1, 1], [], []>} : vector<16x256xf32>, vector<256x128xf32>, vector<16x128xf32> -> vector<16x128xf32>
    %18 = arith.addf %15, %17 : vector<16x128xf32>
    %c0_13 = arith.constant 0 : index
    %c0_14 = arith.constant 0 : index
    %19 = vector.load %arg9[%c0_13, %c0_14] : memref<16x128xf32, #tpu.memory_space<vmem>>, vector<16x128xf32>
    tpu.vector_store %arg9[%c0_13, %c0_14], %18 {strides = array<i32>} : memref<16x128xf32, #tpu.memory_space<vmem>>, vector<16x128xf32>,
    %c0_i32_15 = arith.constant 0 : i32
    %20 = arith.cmpi eq, %arg1, %c0_i32_15 : i32
    %21 = arith.extui %20 : i1 to i32
    %c0_i32_16 = arith.constant 0 : i32
    %22 = arith.cmpi ne, %21, %c0_i32_16 : i32
    scf.if %22 {
      %c0_17 = arith.constant 0 : index
      %c0_18 = arith.constant 0 : index
      %23 = vector.load %arg2[%c0_17, %c0_18] : memref<16x128xf32, #tpu.memory_space<vmem>>, vector<16x128xf32>
      %c0_19 = arith.constant 0 : index
      %c0_20 = arith.constant 0 : index
      %24 = vector.load %arg9[%c0_19, %c0_20] : memref<16x128xf32, #tpu.memory_space<vmem>>, vector<16x128xf32>
      %25 = arith.addf %24, %23 : vector<16x128xf32>
      %c0_21 = arith.constant 0 : index
      %c0_22 = arith.constant 0 : index
      %26 = vector.load %arg7[%c0_21, %c0_22] : memref<16x128xf32, #tpu.memory_space<vmem>>, vector<16x128xf32>
      tpu.vector_store %arg7[%c0_21, %c0_22], %25 {strides = array<i32>} : memref<16x128xf32, #tpu.memory_space<vmem>>, vector<16x128xf32>,
    } else {
    }
    return
  }
  func.func @transform_0(%arg0: i32, %arg1: i32) -> (i32, i32) {
    %c0_i32 = arith.constant 0 : i32
    %c0_i32_0 = arith.constant 0 : i32
    return %arg0, %c0_i32 : i32, i32
  }
  func.func @transform_1(%arg0: i32, %arg1: i32) -> (i32, i32) {
    %c0_i32 = arith.constant 0 : i32
    %c0_i32_0 = arith.constant 0 : i32
    %c0_i32_1 = arith.constant 0 : i32
    return %c0_i32, %c0_i32_0 : i32, i32
  }
  func.func @transform_2(%arg0: i32, %arg1: i32) -> (i32, i32) {
    %c0_i32 = arith.constant 0 : i32
    %c0_i32_0 = arith.constant 0 : i32
    return %c0_i32, %arg1 : i32, i32
  }
  func.func @transform_3(%arg0: i32, %arg1: i32) -> (i32, i32) {
    %c1_i32 = arith.constant 1 : i32
    %0 = arith.addi %c1_i32, %arg1 : i32
    %c0_i32 = arith.constant 0 : i32
    %c0_i32_0 = arith.constant 0 : i32
    return %c0_i32, %0 : i32, i32
  }
  func.func @transform_4(%arg0: i32, %arg1: i32) -> (i32, i32) {
    %c0_i32 = arith.constant 0 : i32
    %c0_i32_0 = arith.constant 0 : i32
    return %arg1, %c0_i32 : i32, i32
  }
  func.func @transform_5(%arg0: i32, %arg1: i32) -> (i32, i32) {
    %c0_i32 = arith.constant 0 : i32
    %c0_i32_0 = arith.constant 0 : i32
    return %arg0, %c0_i32 : i32, i32
  }
}

</mosaic_0001>

<llo_original>
// kernel: tpu_custom_call.1
$region0: #{tpu_custom_call.1}
  #allocation0 [shape = 'u32[]', space=smem, size = 0x4, offset = 0x4, fixed_abs, tag = 'smem constant byte address 0x4 - core index']
  #allocation1 [shape = 'u32[72,128]{1,0:T(1,128)}', space=vmem, size = 0x9000, scoped, tag = 'internal scratch']
  #allocation2 [shape = 'f32[16,128]{1,0:T(8,128)}', space=vmem, size = 0x2000, scoped, tag = 'scratch operand']
  #allocation3 [shape = 'f32[16,128]{1,0:T(8,128)}', space=vmem, size = 0x2000, scoped, tag = 'scratch operand']
  %s0 = inlined_call_operand.hbm [shape: f32[16,128], index: 0, kind: input, shape index: {}]
  %s1 = inlined_call_operand.hbm [shape: f32[1,128], index: 1, kind: input, shape index: {}]
  %s2 = inlined_call_operand.hbm [shape: f32[128,512], index: 2, kind: input, shape index: {}]
  %s3 = inlined_call_operand.hbm [shape: f32[128,512], index: 3, kind: input, shape index: {}]
  %s4 = inlined_call_operand.hbm [shape: f32[256,128], index: 4, kind: input, shape index: {}]
  %s5 = inlined_call_operand.hbm [shape: f32[16,128], index: 5, kind: output, shape index: {}]
  %s6 = sld [smem:[#allocation0]]
  $region58: #{tpu_custom_call.1} parent=0
    _
  %s8 = ssub.s32 1, %s6
  %s9 = scalar_select 0, %s8, %s6
  $region1: #{tpu_custom_call.1} parent=0
    #allocation4 [shape = 'u8[8192]{0}', space=vmem, size = 0x2000, scoped, tag = 'input window, operand 0, single buffered']
    #allocation5 [shape = 's32[1]{0}', space=sflag, size = 0x4, scoped, tag = 'scoped memory for tpu_custom_call.1']
    #allocation6 [shape = 's32[1]{0}', space=sflag, size = 0x4, scoped, tag = 'scoped memory for tpu_custom_call.1']
    #allocation7 [shape = 'u8[512]{0}', space=vmem, size = 0x400, scoped, tag = 'input window, operand 1, single buffered']
    #allocation8 [shape = 's32[1]{0}', space=sflag, size = 0x4, scoped, tag = 'scoped memory for tpu_custom_call.1']
    #allocation9 [shape = 'u8[131072]{0}', space=vmem, size = 0x20000, scoped, tag = 'input window, operand 2, single buffered']
    #allocation10 [shape = 'u8[131072]{0}', space=vmem, size = 0x20000, scoped, tag = 'input window, operand 3, single buffered']
    #allocation11 [shape = 's32[1]{0}', space=sflag, size = 0x4, scoped, tag = 'scoped memory for tpu_custom_call.1']
    #allocation12 [shape = 'u8[131072]{0}', space=vmem, size = 0x20000, scoped, tag = 'input window, operand 4, single buffered']
    #allocation13 [shape = 'u8[8192]{0}', space=vmem, size = 0x2000, scoped, tag = 'output window, operand 0, single buffered']
    %10 = vsyncpa [#allocation5], 0
    %11 = vsyncpa [#allocation8], 0
    %12 = vsyncpa [#allocation11], 0
    %13 = vsyncpa [#allocation6], 0
    // Predicated region
    $region2: #{tpu_custom_call.1} parent=1 // pred_check
      _
    $region3: #{tpu_custom_call.1} parent=1 // pred_check_branch
      %15 = sbr.rel (0) target = $region5
    $region4: #{tpu_custom_call.1} parent=1 // pred_region
      %17 = vsyncadd [#allocation5], 0
      %s18 = sshll.u32 %s0, 4
      %s19 = int_to_ptr.hbm [resolvable:$true] %s18
      %s20 = sshll.u32 [#allocation4], 4
      %s21 = int_to_ptr.vmem [resolvable:$true] %s20
      %26 = dma.hbm_to_vmem [thread:$0]  %s19, 256, %s21, [#allocation5], 128, 128, 8
    $region5: #{tpu_custom_call.1} parent=1 // pred_fallthru
      _
    // Predicated region
    $region6: #{tpu_custom_call.1} parent=1 // pred_check
      _
    $region7: #{tpu_custom_call.1} parent=1 // pred_check_branch
      %28 = sbr.rel (0) target = $region9
    $region8: #{tpu_custom_call.1} parent=1 // pred_region
      %30 = vsyncadd [#allocation8], 0
      %s32 = sshll.u32 %s1, 4
      %s33 = int_to_ptr.hbm [resolvable:$true] %s32
      %s34 = sshll.u32 [#allocation7], 4
      %s35 = int_to_ptr.vmem [resolvable:$true] %s34
      %37 = dma.hbm_to_vmem [thread:$0]  %s33, 16, %s35, [#allocation8]
    $region9: #{tpu_custom_call.1} parent=1 // pred_fallthru
      _
    // Predicated region
    $region10: #{tpu_custom_call.1} parent=1 // pred_check
      _
    $region11: #{tpu_custom_call.1} parent=1 // pred_check_branch
      %39 = sbr.rel (0) target = $region13
    $region12: #{tpu_custom_call.1} parent=1 // pred_region
      %41 = vsyncadd [#allocation8], 0
      %s42 = sshll.u32 %s2, 4
      %s43 = int_to_ptr.hbm [resolvable:$true] %s42
      %s44 = sshll.u32 [#allocation9], 4
      %s45 = int_to_ptr.vmem [resolvable:$true] %s44
      %50 = dma.hbm_to_vmem [thread:$0]  %s43, 4096, %s45, [#allocation8], 512, 256, 16
    $region13: #{tpu_custom_call.1} parent=1 // pred_fallthru
      _
    // Predicated region
    $region14: #{tpu_custom_call.1} parent=1 // pred_check
      _
    $region15: #{tpu_custom_call.1} parent=1 // pred_check_branch
      %52 = sbr.rel (0) target = $region17
    $region16: #{tpu_custom_call.1} parent=1 // pred_region
      %s53 = sadd.s32 0, 1
      %s54 = smul.u32 2, %s53
      %56 = vsyncadd [#allocation11], 0
      %s57 = smul.addr %s54, 8
      %s58 = scalar_lea.hbm %s3, %s57
      %s59 = sshll.u32 %s58, 4
      %s60 = int_to_ptr.hbm [resolvable:$true] %s59
      %s61 = sshll.u32 [#allocation10], 4
      %s62 = int_to_ptr.vmem [resolvable:$true] %s61
      %67 = dma.hbm_to_vmem [thread:$0]  %s60, 4096, %s62, [#allocation11], 512, 256, 16
    $region17: #{tpu_custom_call.1} parent=1 // pred_fallthru
      _
    // Predicated region
    $region18: #{tpu_custom_call.1} parent=1 // pred_check
      _
    $region19: #{tpu_custom_call.1} parent=1 // pred_check_branch
      %69 = sbr.rel (0) target = $region21
    $region20: #{tpu_custom_call.1} parent=1 // pred_region
      %71 = vsyncadd [#allocation11], 0
      %s72 = sshll.u32 %s4, 4
      %s73 = int_to_ptr.hbm [resolvable:$true] %s72
      %s74 = sshll.u32 [#allocation12], 4
      %s75 = int_to_ptr.vmem [resolvable:$true] %s74
      %80 = dma.hbm_to_vmem [thread:$0]  %s73, 4096, %s75, [#allocation11], 128, 128, 8
    $region21: #{tpu_custom_call.1} parent=1 // pred_fallthru
      _
    // Predicated region
    $region22: #{tpu_custom_call.1} parent=1 // pred_check
      _
    $region23: #{tpu_custom_call.1} parent=1 // pred_check_branch
      %82 = sbr.rel (0) target = $region25
    $region24: #{tpu_custom_call.1} parent=1 // pred_region
      %84 = dma.done [#allocation5], 256
    $region25: #{tpu_custom_call.1} parent=1 // pred_fallthru
      _
    // Predicated region
    $region26: #{tpu_custom_call.1} parent=1 // pred_check
      _
    $region27: #{tpu_custom_call.1} parent=1 // pred_check_branch
      %86 = sbr.rel (0) target = $region29
    $region28: #{tpu_custom_call.1} parent=1 // pred_region
      %88 = dma.done [#allocation8], 16
    $region29: #{tpu_custom_call.1} parent=1 // pred_fallthru
      _
    // Predicated region
    $region30: #{tpu_custom_call.1} parent=1 // pred_check
      _
    $region31: #{tpu_custom_call.1} parent=1 // pred_check_branch
      %90 = sbr.rel (0) target = $region33
    $region32: #{tpu_custom_call.1} parent=1 // pred_region
      %92 = dma.done [#allocation8], 4096
    $region33: #{tpu_custom_call.1} parent=1 // pred_fallthru
      _
    // Predicated region
    $region34: #{tpu_custom_call.1} parent=1 // pred_check
      _
    $region35: #{tpu_custom_call.1} parent=1 // pred_check_branch
      %94 = sbr.rel (0) target = $region37
    $region36: #{tpu_custom_call.1} parent=1 // pred_region
      %96 = dma.done [#allocation11], 4096
    $region37: #{tpu_custom_call.1} parent=1 // pred_fallthru
      _
    // Predicated region
    $region38: #{tpu_custom_call.1} parent=1 // pred_check
      _
    $region39: #{tpu_custom_call.1} parent=1 // pred_check_branch
      %98 = sbr.rel (0) target = $region41
    $region40: #{tpu_custom_call.1} parent=1 // pred_region
      %100 = dma.done [#allocation11], 4096
    $region41: #{tpu_custom_call.1} parent=1 // pred_fallthru
      _
    %s101 = sadd.s32 0, 1
    %s102 = smul.u32 2, %s101
    %p103 = scmp.eq.s32.totalorder 0, 0
    // Predicated region
    $region42: #{tpu_custom_call.1} parent=1 // pred_check
      %p104 = pneg %p103
    $region43: #{tpu_custom_call.1} parent=1 // pred_check_branch
      %106 = sbr.rel (%p104) target = $region45
    $region44: #{tpu_custom_call.1} parent=1 // pred_region
      %v107 = vld [vmem:[#allocation4] sm:$0xff]
      %v108 = vld [vmem:[#allocation4 + $0x8] sm:$0xff]
      %v109 = vmul.f32 %v107, %v107
      %v110 = vmul.f32 %v108, %v108
      %111 = vadd.xlane.f32.xlu0 %v109
      %v112 = vpop.xlane.xlu0 %111
      %113 = vadd.xlane.f32.xlu0 %v110
      %v114 = vpop.xlane.xlu0 %113
      %v115 = vrcp.pop 128.0
      %v116 = vmul.f32 128.0, %v115
      %v117 = vsub.f32 1.0, %v116
      %v118 = vmul.f32 %v115, %v117
      %v119 = vadd.f32 %v115, %v118
      %vm120 = vweird.f32 %v115
      %v121 = vsel %vm120, %v115, %v119
      %v122 = vmul.f32 %v112, %v121
      %v123 = vmul.f32 %v114, %v121
      %v124 = vadd.f32 %v122, 1e-06
      %v125 = vadd.f32 %v123, 1e-06
      %v126 = vrsqrt.pop %v124
      %v127 = vmul.f32 %v126, %v124
      %v128 = vmul.f32 %v127, %v126
      %v129 = vmul.f32 0.5, %v128
      %v130 = vsub.f32 1.5, %v129
      %v131 = vmul.f32 %v126, %v130
      %vm132 = vweird.f32 %v124
      %vm133 = vweird.f32 %v126
      %vm134 = vmor %vm132, %vm133
      %v135 = vsel %vm134, %v126, %v131
      %v136 = vrsqrt.pop %v125
      %v137 = vmul.f32 %v136, %v125
      %v138 = vmul.f32 %v137, %v136
      %v139 = vmul.f32 0.5, %v138
      %v140 = vsub.f32 1.5, %v139
      %v141 = vmul.f32 %v136, %v140
      %vm142 = vweird.f32 %v125
      %vm143 = vweird.f32 %v136
      %vm144 = vmor %vm142, %vm143
      %v145 = vsel %vm144, %v136, %v141
      %v146 = vmul.f32 %v107, %v135
      %v147 = vmul.f32 %v108, %v145
      %v148 = vld [vmem:[#allocation7] sm:$0x1]
      %v150 = vperm.slane %v148, 0
      %v152 = vmul.f32 %v146, %v150
      %v153 = vmul.f32 %v147, %v150
      %154 = vst [vmem:[#allocation2] sm:$0xff] %v152
      %155 = vst [vmem:[#allocation2 + $0x8] sm:$0xff] %v153
      %156 = vst [vmem:[#allocation3] sm:$0xff] 0.0
      %157 = vst [vmem:[#allocation3 + $0x8] sm:$0xff] 0.0
    $region45: #{tpu_custom_call.1} parent=1 // pred_fallthru
      _
    %v158 = vld [vmem:[#allocation2] sm:$0xff]
    %v159 = vld [vmem:[#allocation2 + $0x8] sm:$0xff]
    %v160 = vld [vmem:[#allocation9] sm:$0xff]
    %v161 = vld [vmem:[#allocation9 + $0x8] sm:$0xff]
    %v162 = vld [vmem:[#allocation9 + $0x10] sm:$0xff]
    %v163 = vld [vmem:[#allocation9 + $0x18] sm:$0xff]
    %v164 = vld [vmem:[#allocation9 + $0x20] sm:$0xff]
    %v165 = vld [vmem:[#allocation9 + $0x28] sm:$0xff]
    %v166 = vld [vmem:[#allocation9 + $0x30] sm:$0xff]
    %v167 = vld [vmem:[#allocation9 + $0x38] sm:$0xff]
    %v168 = vld [vmem:[#allocation9 + $0x40] sm:$0xff]
    %v169 = vld [vmem:[#allocation9 + $0x48] sm:$0xff]
    %v170 = vld [vmem:[#allocation9 + $0x50] sm:$0xff]
    %v171 = vld [vmem:[#allocation9 + $0x58] sm:$0xff]
    %v172 = vld [vmem:[#allocation9 + $0x60] sm:$0xff]
    %v173 = vld [vmem:[#allocation9 + $0x68] sm:$0xff]
    %v174 = vld [vmem:[#allocation9 + $0x70] sm:$0xff]
    %v175 = vld [vmem:[#allocation9 + $0x78] sm:$0xff]
    %v176 = vld [vmem:[#allocation9 + $0x80] sm:$0xff]
    %v177 = vld [vmem:[#allocation9 + $0x88] sm:$0xff]
    %v178 = vld [vmem:[#allocation9 + $0x90] sm:$0xff]
    %v179 = vld [vmem:[#allocation9 + $0x98] sm:$0xff]
    %v180 = vld [vmem:[#allocation9 + $0xa0] sm:$0xff]
    %v181 = vld [vmem:[#allocation9 + $0xa8] sm:$0xff]
    %v182 = vld [vmem:[#allocation9 + $0xb0] sm:$0xff]
    %v183 = vld [vmem:[#allocation9 + $0xb8] sm:$0xff]
    %v184 = vld [vmem:[#allocation9 + $0xc0] sm:$0xff]
    %v185 = vld [vmem:[#allocation9 + $0xc8] sm:$0xff]
    %v186 = vld [vmem:[#allocation9 + $0xd0] sm:$0xff]
    %v187 = vld [vmem:[#allocation9 + $0xd8] sm:$0xff]
    %v188 = vld [vmem:[#allocation9 + $0xe0] sm:$0xff]
    %v189 = vld [vmem:[#allocation9 + $0xe8] sm:$0xff]
    %v190 = vld [vmem:[#allocation9 + $0xf0] sm:$0xff]
    %v191 = vld [vmem:[#allocation9 + $0xf8] sm:$0xff]
    %192 = vmatpush.msra.mxu0 %v190
    %193 = vmatpush.msra.mxu0 %v188
    %194 = vmatpush.msra.mxu0 %v186
    %195 = vmatpush.msra.mxu0 %v184
    %196 = vmatpush.msra.mxu0 %v182
    %197 = vmatpush.msra.mxu0 %v180
    %198 = vmatpush.msra.mxu0 %v178
    %199 = vmatpush.msra.mxu0 %v176
    %200 = vmatpush.msra.mxu0 %v174
    %201 = vmatpush.msra.mxu0 %v172
    %202 = vmatpush.msra.mxu0 %v170
    %203 = vmatpush.msra.mxu0 %v168
    %204 = vmatpush.msra.mxu0 %v166
    %205 = vmatpush.msra.mxu0 %v164
    %206 = vmatpush.msra.mxu0 %v162
    %207 = vmatpush.msra.mxu0 %v160
    %208 = vmatmul.f32.gmra.mxu0 %v158
    %v209 = vpop.f32.mrf.mxu0
    %v210 = vadd.f32 0.0, %v209
    %211 = vmatmul.f32.gmra.mxu0 %v159
    %v212 = vpop.f32.mrf.mxu0
    %v213 = vadd.f32 0.0, %v212
    %214 = vdwg.mxu0
    %215 = vmatpush.msra.mxu0 %v191
    %216 = vmatpush.msra.mxu0 %v189
    %217 = vmatpush.msra.mxu0 %v187
    %218 = vmatpush.msra.mxu0 %v185
    %219 = vmatpush.msra.mxu0 %v183
    %220 = vmatpush.msra.mxu0 %v181
    %221 = vmatpush.msra.mxu0 %v179
    %222 = vmatpush.msra.mxu0 %v177
    %223 = vmatpush.msra.mxu0 %v175
    %224 = vmatpush.msra.mxu0 %v173
    %225 = vmatpush.msra.mxu0 %v171
    %226 = vmatpush.msra.mxu0 %v169
    %227 = vmatpush.msra.mxu0 %v167
    %228 = vmatpush.msra.mxu0 %v165
    %229 = vmatpush.msra.mxu0 %v163
    %230 = vmatpush.msra.mxu0 %v161
    %231 = vmatmul.f32.gmra.mxu0 %v158
    %v232 = vpop.f32.mrf.mxu0
    %v233 = vadd.f32 0.0, %v232
    %234 = vmatmul.f32.gmra.mxu0 %v159
    %v235 = vpop.f32.mrf.mxu0
    %v236 = vadd.f32 0.0, %v235
    %237 = vdwg.mxu0
    %v238 = vld [vmem:[#allocation10] sm:$0xff]
    %v239 = vld [vmem:[#allocation10 + $0x8] sm:$0xff]
    %v240 = vld [vmem:[#allocation10 + $0x10] sm:$0xff]
    %v241 = vld [vmem:[#allocation10 + $0x18] sm:$0xff]
    %v242 = vld [vmem:[#allocation10 + $0x20] sm:$0xff]
    %v243 = vld [vmem:[#allocation10 + $0x28] sm:$0xff]
    %v244 = vld [vmem:[#allocation10 + $0x30] sm:$0xff]
    %v245 = vld [vmem:[#allocation10 + $0x38] sm:$0xff]
    %v246 = vld [vmem:[#allocation10 + $0x40] sm:$0xff]
    %v247 = vld [vmem:[#allocation10 + $0x48] sm:$0xff]
    %v248 = vld [vmem:[#allocation10 + $0x50] sm:$0xff]
    %v249 = vld [vmem:[#allocation10 + $0x58] sm:$0xff]
    %v250 = vld [vmem:[#allocation10 + $0x60] sm:$0xff]
    %v251 = vld [vmem:[#allocation10 + $0x68] sm:$0xff]
    %v252 = vld [vmem:[#allocation10 + $0x70] sm:$0xff]
    %v253 = vld [vmem:[#allocation10 + $0x78] sm:$0xff]
    %v254 = vld [vmem:[#allocation10 + $0x80] sm:$0xff]
    %v255 = vld [vmem:[#allocation10 + $0x88] sm:$0xff]
    %v256 = vld [vmem:[#allocation10 + $0x90] sm:$0xff]
    %v257 = vld [vmem:[#allocation10 + $0x98] sm:$0xff]
    %v258 = vld [vmem:[#allocation10 + $0xa0] sm:$0xff]
    %v259 = vld [vmem:[#allocation10 + $0xa8] sm:$0xff]
    %v260 = vld [vmem:[#allocation10 + $0xb0] sm:$0xff]
    %v261 = vld [vmem:[#allocation10 + $0xb8] sm:$0xff]
    %v262 = vld [vmem:[#allocation10 + $0xc0] sm:$0xff]
    %v263 = vld [vmem:[#allocation10 + $0xc8] sm:$0xff]
    %v264 = vld [vmem:[#allocation10 + $0xd0] sm:$0xff]
    %v265 = vld [vmem:[#allocation10 + $0xd8] sm:$0xff]
    %v266 = vld [vmem:[#allocation10 + $0xe0] sm:$0xff]
    %v267 = vld [vmem:[#allocation10 + $0xe8] sm:$0xff]
    %v268 = vld [vmem:[#allocation10 + $0xf0] sm:$0xff]
    %v269 = vld [vmem:[#allocation10 + $0xf8] sm:$0xff]
    %270 = vmatpush.msra.mxu0 %v268
    %271 = vmatpush.msra.mxu0 %v266
    %272 = vmatpush.msra.mxu0 %v264
    %273 = vmatpush.msra.mxu0 %v262
    %274 = vmatpush.msra.mxu0 %v260
    %275 = vmatpush.msra.mxu0 %v258
    %276 = vmatpush.msra.mxu0 %v256
    %277 = vmatpush.msra.mxu0 %v254
    %278 = vmatpush.msra.mxu0 %v252
    %279 = vmatpush.msra.mxu0 %v250
    %280 = vmatpush.msra.mxu0 %v248
    %281 = vmatpush.msra.mxu0 %v246
    %282 = vmatpush.msra.mxu0 %v244
    %283 = vmatpush.msra.mxu0 %v242
    %284 = vmatpush.msra.mxu0 %v240
    %285 = vmatpush.msra.mxu0 %v238
    %286 = vmatmul.f32.gmra.mxu0 %v158
    %v287 = vpop.f32.mrf.mxu0
    %v288 = vadd.f32 0.0, %v287
    %289 = vmatmul.f32.gmra.mxu0 %v159
    %v290 = vpop.f32.mrf.mxu0
    %v291 = vadd.f32 0.0, %v290
    %292 = vdwg.mxu0
    %293 = vmatpush.msra.mxu0 %v269
    %294 = vmatpush.msra.mxu0 %v267
    %295 = vmatpush.msra.mxu0 %v265
    %296 = vmatpush.msra.mxu0 %v263
    %297 = vmatpush.msra.mxu0 %v261
    %298 = vmatpush.msra.mxu0 %v259
    %299 = vmatpush.msra.mxu0 %v257
    %300 = vmatpush.msra.mxu0 %v255
    %301 = vmatpush.msra.mxu0 %v253
    %302 = vmatpush.msra.mxu0 %v251
    %303 = vmatpush.msra.mxu0 %v249
    %304 = vmatpush.msra.mxu0 %v247
    %305 = vmatpush.msra.mxu0 %v245
    %306 = vmatpush.msra.mxu0 %v243
    %307 = vmatpush.msra.mxu0 %v241
    %308 = vmatpush.msra.mxu0 %v239
    %309 = vmatmul.f32.gmra.mxu0 %v158
    %v310 = vpop.f32.mrf.mxu0
    %v311 = vadd.f32 0.0, %v310
    %312 = vmatmul.f32.gmra.mxu0 %v159
    %v313 = vpop.f32.mrf.mxu0
    %v314 = vadd.f32 0.0, %v313
    %315 = vdwg.mxu0
    %v316 = vxor.u32 %v210, 2147483648
    %v317 = vxor.u32 %v233, 2147483648
    %v318 = vxor.u32 %v213, 2147483648
    %v319 = vxor.u32 %v236, 2147483648
    %v320 = vmul.f32 %v316, 1.442695
    %v321 = vpow.pop %v320
    %v322 = vmul.f32 %v317, 1.442695
    %v323 = vpow.pop %v322
    %v324 = vmul.f32 %v318, 1.442695
    %v325 = vpow.pop %v324
    %v326 = vmul.f32 %v319, 1.442695
    %v327 = vpow.pop %v326
    %v328 = vadd.f32 %v321, 1.0
    %v329 = vadd.f32 %v323, 1.0
    %v330 = vadd.f32 %v325, 1.0
    %v331 = vadd.f32 %v327, 1.0
    %v332 = vrcp.pop %v328
    %v333 = vmul.f32 %v328, %v332
    %v334 = vsub.f32 1.0, %v333
    %v335 = vmul.f32 %v332, %v334
    %v336 = vadd.f32 %v332, %v335
    %vm337 = vweird.f32 %v328
    %vm338 = vweird.f32 %v332
    %vm339 = vmor %vm337, %vm338
    %v340 = vsel %vm339, %v332, %v336
    %v341 = vand.u32 2147483647, %v328
    %vm342 = vcmp.eq.f32.partialorder %v341, 8.507059e+37
    %v343 = vand.u32 %v328, 2147483648
    %v344 = vor.u32 1.1754944e-38, %v343
    %v345 = vsel %vm342, %v344, %v340
    %v346 = vmul.f32 1.0, %v345
    %v347 = vrcp.pop %v329
    %v348 = vmul.f32 %v329, %v347
    %v349 = vsub.f32 1.0, %v348
    %v350 = vmul.f32 %v347, %v349
    %v351 = vadd.f32 %v347, %v350
    %vm352 = vweird.f32 %v329
    %vm353 = vweird.f32 %v347
    %vm354 = vmor %vm352, %vm353
    %v355 = vsel %vm354, %v347, %v351
    %v356 = vand.u32 2147483647, %v329
    %vm357 = vcmp.eq.f32.partialorder %v356, 8.507059e+37
    %v358 = vand.u32 %v329, 2147483648
    %v359 = vor.u32 1.1754944e-38, %v358
    %v360 = vsel %vm357, %v359, %v355
    %v361 = vmul.f32 1.0, %v360
    %v362 = vrcp.pop %v330
    %v363 = vmul.f32 %v330, %v362
    %v364 = vsub.f32 1.0, %v363
    %v365 = vmul.f32 %v362, %v364
    %v366 = vadd.f32 %v362, %v365
    %vm367 = vweird.f32 %v330
    %vm368 = vweird.f32 %v362
    %vm369 = vmor %vm367, %vm368
    %v370 = vsel %vm369, %v362, %v366
    %v371 = vand.u32 2147483647, %v330
    %vm372 = vcmp.eq.f32.partialorder %v371, 8.507059e+37
    %v373 = vand.u32 %v330, 2147483648
    %v374 = vor.u32 1.1754944e-38, %v373
    %v375 = vsel %vm372, %v374, %v370
    %v376 = vmul.f32 1.0, %v375
    %v377 = vrcp.pop %v331
    %v378 = vmul.f32 %v331, %v377
    %v379 = vsub.f32 1.0, %v378
    %v380 = vmul.f32 %v377, %v379
    %v381 = vadd.f32 %v377, %v380
    %vm382 = vweird.f32 %v331
    %vm383 = vweird.f32 %v377
    %vm384 = vmor %vm382, %vm383
    %v385 = vsel %vm384, %v377, %v381
    %v386 = vand.u32 2147483647, %v331
    %vm387 = vcmp.eq.f32.partialorder %v386, 8.507059e+37
    %v388 = vand.u32 %v331, 2147483648
    %v389 = vor.u32 1.1754944e-38, %v388
    %v390 = vsel %vm387, %v389, %v385
    %v391 = vmul.f32 1.0, %v390
    %v392 = vmul.f32 %v210, %v346
    %v393 = vmul.f32 %v233, %v361
    %v394 = vmul.f32 %v213, %v376
    %v395 = vmul.f32 %v236, %v391
    %v396 = vmul.f32 %v392, %v288
    %v397 = vmul.f32 %v393, %v311
    %v398 = vmul.f32 %v394, %v291
    %v399 = vmul.f32 %v395, %v314
    %v400 = vld [vmem:[#allocation3] sm:$0xff]
    %v401 = vld [vmem:[#allocation3 + $0x8] sm:$0xff]
    %v402 = vld [vmem:[#allocation12] sm:$0xff]
    %v403 = vld [vmem:[#allocation12 + $0x8] sm:$0xff]
    %v404 = vld [vmem:[#allocation12 + $0x10] sm:$0xff]
    %v405 = vld [vmem:[#allocation12 + $0x18] sm:$0xff]
    %v406 = vld [vmem:[#allocation12 + $0x20] sm:$0xff]
    %v407 = vld [vmem:[#allocation12 + $0x28] sm:$0xff]
    %v408 = vld [vmem:[#allocation12 + $0x30] sm:$0xff]
    %v409 = vld [vmem:[#allocation12 + $0x38] sm:$0xff]
    %v410 = vld [vmem:[#allocation12 + $0x40] sm:$0xff]
    %v411 = vld [vmem:[#allocation12 + $0x48] sm:$0xff]
    %v412 = vld [vmem:[#allocation12 + $0x50] sm:$0xff]
    %v413 = vld [vmem:[#allocation12 + $0x58] sm:$0xff]
    %v414 = vld [vmem:[#allocation12 + $0x60] sm:$0xff]
    %v415 = vld [vmem:[#allocation12 + $0x68] sm:$0xff]
    %v416 = vld [vmem:[#allocation12 + $0x70] sm:$0xff]
    %v417 = vld [vmem:[#allocation12 + $0x78] sm:$0xff]
    %v418 = vld [vmem:[#allocation12 + $0x80] sm:$0xff]
    %v419 = vld [vmem:[#allocation12 + $0x88] sm:$0xff]
    %v420 = vld [vmem:[#allocation12 + $0x90] sm:$0xff]
    %v421 = vld [vmem:[#allocation12 + $0x98] sm:$0xff]
    %v422 = vld [vmem:[#allocation12 + $0xa0] sm:$0xff]
    %v423 = vld [vmem:[#allocation12 + $0xa8] sm:$0xff]
    %v424 = vld [vmem:[#allocation12 + $0xb0] sm:$0xff]
    %v425 = vld [vmem:[#allocation12 + $0xb8] sm:$0xff]
    %v426 = vld [vmem:[#allocation12 + $0xc0] sm:$0xff]
    %v427 = vld [vmem:[#allocation12 + $0xc8] sm:$0xff]
    %v428 = vld [vmem:[#allocation12 + $0xd0] sm:$0xff]
    %v429 = vld [vmem:[#allocation12 + $0xd8] sm:$0xff]
    %v430 = vld [vmem:[#allocation12 + $0xe0] sm:$0xff]
    %v431 = vld [vmem:[#allocation12 + $0xe8] sm:$0xff]
    %v432 = vld [vmem:[#allocation12 + $0xf0] sm:$0xff]
    %v433 = vld [vmem:[#allocation12 + $0xf8] sm:$0xff]
    %434 = vmatpush.msra.mxu0 %v417
    %435 = vmatpush.msra.mxu0 %v416
    %436 = vmatpush.msra.mxu0 %v415
    %437 = vmatpush.msra.mxu0 %v414
    %438 = vmatpush.msra.mxu0 %v413
    %439 = vmatpush.msra.mxu0 %v412
    %440 = vmatpush.msra.mxu0 %v411
    %441 = vmatpush.msra.mxu0 %v410
    %442 = vmatpush.msra.mxu0 %v409
    %443 = vmatpush.msra.mxu0 %v408
    %444 = vmatpush.msra.mxu0 %v407
    %445 = vmatpush.msra.mxu0 %v406
    %446 = vmatpush.msra.mxu0 %v405
    %447 = vmatpush.msra.mxu0 %v404
    %448 = vmatpush.msra.mxu0 %v403
    %449 = vmatpush.msra.mxu0 %v402
    %450 = vmatmul.f32.gmra.mxu0 %v396
    %v451 = vpop.f32.mrf.mxu0
    %v452 = vadd.f32 0.0, %v451
    %453 = vmatmul.f32.gmra.mxu0 %v398
    %v454 = vpop.f32.mrf.mxu0
    %v455 = vadd.f32 0.0, %v454
    %456 = vdwg.mxu0
    %457 = vmatpush.msra.mxu0 %v433
    %458 = vmatpush.msra.mxu0 %v432
    %459 = vmatpush.msra.mxu0 %v431
    %460 = vmatpush.msra.mxu0 %v430
    %461 = vmatpush.msra.mxu0 %v429
    %462 = vmatpush.msra.mxu0 %v428
    %463 = vmatpush.msra.mxu0 %v427
    %464 = vmatpush.msra.mxu0 %v426
    %465 = vmatpush.msra.mxu0 %v425
    %466 = vmatpush.msra.mxu0 %v424
    %467 = vmatpush.msra.mxu0 %v423
    %468 = vmatpush.msra.mxu0 %v422
    %469 = vmatpush.msra.mxu0 %v421
    %470 = vmatpush.msra.mxu0 %v420
    %471 = vmatpush.msra.mxu0 %v419
    %472 = vmatpush.msra.mxu0 %v418
    %473 = vmatmul.f32.gmra.mxu0 %v397
    %v474 = vpop.f32.mrf.mxu0
    %v475 = vadd.f32 %v452, %v474
    %476 = vmatmul.f32.gmra.mxu0 %v399
    %v477 = vpop.f32.mrf.mxu0
    %v478 = vadd.f32 %v455, %v477
    %479 = vdwg.mxu0
    %v480 = vadd.f32 %v400, %v475
    %v481 = vadd.f32 %v401, %v478
    %482 = vst [vmem:[#allocation3] sm:$0xff] %v480
    %483 = vst [vmem:[#allocation3 + $0x8] sm:$0xff] %v481
    // Predicated region
    $region46: #{tpu_custom_call.1} parent=1 // pred_check
      %p484 = pneg %p103
    $region47: #{tpu_custom_call.1} parent=1 // pred_check_branch
      %486 = sbr.rel (%p484) target = $region49
    $region48: #{tpu_custom_call.1} parent=1 // pred_region
      %v487 = vld [vmem:[#allocation4] sm:$0xff]
      %v488 = vld [vmem:[#allocation4 + $0x8] sm:$0xff]
      %v489 = vld [vmem:[#allocation3] sm:$0xff]
      %v490 = vld [vmem:[#allocation3 + $0x8] sm:$0xff]
      %v491 = vadd.f32 %v489, %v487
      %v492 = vadd.f32 %v490, %v488
      %493 = vst [vmem:[#allocation13] sm:$0xff] %v491
      %494 = vst [vmem:[#allocation13 + $0x8] sm:$0xff] %v492
    $region49: #{tpu_custom_call.1} parent=1 // pred_fallthru
      _
    // Predicated region
    $region50: #{tpu_custom_call.1} parent=1 // pred_check
      _
    $region51: #{tpu_custom_call.1} parent=1 // pred_check_branch
      %496 = sbr.rel (0) target = $region53
    $region52: #{tpu_custom_call.1} parent=1 // pred_region
      %498 = vsyncadd [#allocation6], 0
      %s499 = sshll.u32 [#allocation13], 4
      %s500 = int_to_ptr.vmem [resolvable:$true] %s499
      %s501 = sshll.u32 %s5, 4
      %s502 = int_to_ptr.hbm [resolvable:$true] %s501
      %507 = dma.vmem_to_hbm [thread:$0]  %s500, 256, %s502, [#allocation6], 128, 128, 8
    $region53: #{tpu_custom_call.1} parent=1 // pred_fallthru
      _
    // Predicated region
    $region54: #{tpu_custom_call.1} parent=1 // pred_check
      _
    $region55: #{tpu_custom_call.1} parent=1 // pred_check_branch
      %509 = sbr.rel (0) target = $region57
    $region56: #{tpu_custom_call.1} parent=1 // pred_region
      %511 = dma.done [#allocation6], 256
    $region57: #{tpu_custom_call.1} parent=1 // pred_fallthru
      _
    %512 = vsyncpa [#allocation5], 1
    %513 = vsyncpa [#allocation8], 1
    %514 = vsyncpa [#allocation11], 1
    %515 = vsyncpa [#allocation6], 1

</llo_original>
